<compile_context>
chip_gen: v7x
topology: tpu7x:2x2x1
jax: 0.10.0
libtpu: 0.0.40
codegen_flags: <defaults>
</compile_context>

<pallas_src>
import jax
import jax.numpy as jnp
from jax.experimental import pallas as pl
from jax.experimental.pallas import tpu as pltpu


def _make_concat_dma_kernel(dims):
    """Kernel: one HBM->HBM async copy per modality into its column slice."""
    offsets = []
    off = 0
    for d in dims:
        offsets.append(off)
        off += d

    n_in = len(dims)

    def kernel(*refs):
        in_refs = refs[:n_in]          # raw HBM refs (memory_space=pl.ANY)
        out_ref = refs[n_in]           # raw HBM ref for the fused output
        sem = refs[n_in + 1]           # DMA semaphores, one per modality

        copies = []
        for m, (d, o) in enumerate(zip(dims, offsets)):
            # Static column slice of the output -> strided-destination DMA.
            cp = pltpu.make_async_copy(in_refs[m],
                                       out_ref.at[:, o:o + d],
                                       sem.at[m])
            cp.start()
            copies.append(cp)
        # All modality DMAs are in flight concurrently; now drain them.
        for cp in copies:
            cp.wait()

    return kernel


def multimodal_fusion(embs):
    """Pallas equivalent of MultiModalFusion.forward: concat along dim=1."""
    modal_num = len(embs)
    assert modal_num >= 1
    N = embs[0].shape[0]
    dtype = embs[0].dtype
    dims = tuple(int(e.shape[1]) for e in embs)
    for e in embs:
        assert e.shape[0] == N and e.dtype == dtype
    total = sum(dims)
    itemsize = jnp.dtype(dtype).itemsize

    kernel = _make_concat_dma_kernel(dims)

    cost = pl.CostEstimate(
        flops=0,
        transcendentals=0,
        bytes_accessed=2 * N * total * itemsize,  # read everything + write once
    )

    return pl.pallas_call(
        kernel,
        out_shape=jax.ShapeDtypeStruct((N, total), dtype),
        # Raw HBM refs everywhere: no VMEM round-trip, no pipeline steps.
        in_specs=[pl.BlockSpec(memory_space=pl.ANY) for _ in embs],
        out_specs=pl.BlockSpec(memory_space=pl.ANY),
        scratch_shapes=[pltpu.SemaphoreType.DMA((modal_num,))],
        compiler_params=pltpu.CompilerParams(has_side_effects=True),
        cost_estimate=cost,
    )(*embs)


class MultiModalFusion:
    """Thin wrapper mirroring the PyTorch module's interface."""

    def __init__(self, modal_num, with_weight=1):
        self.modal_num = modal_num
        self.requires_grad = with_weight > 0  # no effect on forward

    def __call__(self, embs):
        assert len(embs) == self.modal_num
        return multimodal_fusion(embs)


if __name__ == "__main__":
    key = jax.random.PRNGKey(0)
    modal_num = 3
    N, D = 8, 128  # small, lane-aligned feature width per modality

    keys = jax.random.split(key, modal_num)
    embs = [jax.random.normal(k, (N, D), dtype=jnp.float32) for k in keys]

    fusion = MultiModalFusion(modal_num, with_weight=1)
    joint = fusion(embs)
    joint = jax.block_until_ready(joint)

    # correctness check against the plain-JAX reference (torch.cat(embs, dim=1))
    ref = jnp.concatenate(embs, axis=1)
    assert joint.shape == (N, modal_num * D)
    assert jnp.array_equal(joint, ref)

    print("KERNEL_OK")
</pallas_src>

<mosaic_0001>
module attributes {stable_mosaic.version = 11 : i64} {
  func.func @kernel(%arg0: memref<8x128xf32, #tpu.memory_space<any>>, %arg1: memref<8x128xf32, #tpu.memory_space<any>>, %arg2: memref<8x128xf32, #tpu.memory_space<any>>, %arg3: memref<8x384xf32, #tpu.memory_space<any>>, %arg4: memref<3x!tpu.dma_semaphore, #tpu.memory_space<semaphore_mem>>) attributes {dimension_semantics = [], scalar_prefetch = 0 : i64, scratch_operands = 1 : i64, tpu.core_type = #tpu.core_type<tc>} {
    %c0_i32 = arith.constant 0 : i32
    %c0_i32_0 = arith.constant 0 : i32
    %c0_i32_1 = arith.constant 0 : i32
    %0 = tpu.memref_slice %arg3[%c0_i32_0, %c0_i32_1] : memref<8x384xf32, #tpu.memory_space<any>> -> memref<8x128xf32, #tpu.memory_space<any>>
    %1 = tpu.memref_slice %arg4[%c0_i32] : memref<3x!tpu.dma_semaphore, #tpu.memory_space<semaphore_mem>> -> memref<1x!tpu.dma_semaphore, #tpu.memory_space<semaphore_mem>>
    %2 = tpu.memref_squeeze %1 : memref<1x!tpu.dma_semaphore, #tpu.memory_space<semaphore_mem>> -> memref<!tpu.dma_semaphore, #tpu.memory_space<semaphore_mem>>
    tpu.enqueue_dma source(%arg0 : memref<8x128xf32, #tpu.memory_space<any>>) target(%0 : memref<8x128xf32, #tpu.memory_space<any>>) target_semaphore(%2 : memref<!tpu.dma_semaphore, #tpu.memory_space<semaphore_mem>>)
    %c1_i32 = arith.constant 1 : i32
    %c0_i32_2 = arith.constant 0 : i32
    %c128_i32 = arith.constant 128 : i32
    %3 = tpu.memref_slice %arg3[%c0_i32_2, %c128_i32] : memref<8x384xf32, #tpu.memory_space<any>> -> memref<8x128xf32, #tpu.memory_space<any>>
    %4 = tpu.memref_slice %arg4[%c1_i32] : memref<3x!tpu.dma_semaphore, #tpu.memory_space<semaphore_mem>> -> memref<1x!tpu.dma_semaphore, #tpu.memory_space<semaphore_mem>>
    %5 = tpu.memref_squeeze %4 : memref<1x!tpu.dma_semaphore, #tpu.memory_space<semaphore_mem>> -> memref<!tpu.dma_semaphore, #tpu.memory_space<semaphore_mem>>
    tpu.enqueue_dma source(%arg1 : memref<8x128xf32, #tpu.memory_space<any>>) target(%3 : memref<8x128xf32, #tpu.memory_space<any>>) target_semaphore(%5 : memref<!tpu.dma_semaphore, #tpu.memory_space<semaphore_mem>>)
    %c2_i32 = arith.constant 2 : i32
    %c0_i32_3 = arith.constant 0 : i32
    %c256_i32 = arith.constant 256 : i32
    %6 = tpu.memref_slice %arg3[%c0_i32_3, %c256_i32] : memref<8x384xf32, #tpu.memory_space<any>> -> memref<8x128xf32, #tpu.memory_space<any>>
    %7 = tpu.memref_slice %arg4[%c2_i32] : memref<3x!tpu.dma_semaphore, #tpu.memory_space<semaphore_mem>> -> memref<1x!tpu.dma_semaphore, #tpu.memory_space<semaphore_mem>>
    %8 = tpu.memref_squeeze %7 : memref<1x!tpu.dma_semaphore, #tpu.memory_space<semaphore_mem>> -> memref<!tpu.dma_semaphore, #tpu.memory_space<semaphore_mem>>
    tpu.enqueue_dma source(%arg2 : memref<8x128xf32, #tpu.memory_space<any>>) target(%6 : memref<8x128xf32, #tpu.memory_space<any>>) target_semaphore(%8 : memref<!tpu.dma_semaphore, #tpu.memory_space<semaphore_mem>>)
    %c0_i32_4 = arith.constant 0 : i32
    %c0_i32_5 = arith.constant 0 : i32
    %c0_i32_6 = arith.constant 0 : i32
    %9 = tpu.memref_slice %arg3[%c0_i32_5, %c0_i32_6] : memref<8x384xf32, #tpu.memory_space<any>> -> memref<8x128xf32, #tpu.memory_space<any>>
    %10 = tpu.memref_slice %arg4[%c0_i32_4] : memref<3x!tpu.dma_semaphore, #tpu.memory_space<semaphore_mem>> -> memref<1x!tpu.dma_semaphore, #tpu.memory_space<semaphore_mem>>
    %11 = tpu.memref_squeeze %10 : memref<1x!tpu.dma_semaphore, #tpu.memory_space<semaphore_mem>> -> memref<!tpu.dma_semaphore, #tpu.memory_space<semaphore_mem>>
    tpu.wait_dma2 semaphore(%11 : memref<!tpu.dma_semaphore, #tpu.memory_space<semaphore_mem>>) src(%arg0 : memref<8x128xf32, #tpu.memory_space<any>>) dst(%9 : memref<8x128xf32, #tpu.memory_space<any>>)
    %c1_i32_7 = arith.constant 1 : i32
    %c0_i32_8 = arith.constant 0 : i32
    %c128_i32_9 = arith.constant 128 : i32
    %12 = tpu.memref_slice %arg3[%c0_i32_8, %c128_i32_9] : memref<8x384xf32, #tpu.memory_space<any>> -> memref<8x128xf32, #tpu.memory_space<any>>
    %13 = tpu.memref_slice %arg4[%c1_i32_7] : memref<3x!tpu.dma_semaphore, #tpu.memory_space<semaphore_mem>> -> memref<1x!tpu.dma_semaphore, #tpu.memory_space<semaphore_mem>>
    %14 = tpu.memref_squeeze %13 : memref<1x!tpu.dma_semaphore, #tpu.memory_space<semaphore_mem>> -> memref<!tpu.dma_semaphore, #tpu.memory_space<semaphore_mem>>
    tpu.wait_dma2 semaphore(%14 : memref<!tpu.dma_semaphore, #tpu.memory_space<semaphore_mem>>) src(%arg1 : memref<8x128xf32, #tpu.memory_space<any>>) dst(%12 : memref<8x128xf32, #tpu.memory_space<any>>)
    %c2_i32_10 = arith.constant 2 : i32
    %c0_i32_11 = arith.constant 0 : i32
    %c256_i32_12 = arith.constant 256 : i32
    %15 = tpu.memref_slice %arg3[%c0_i32_11, %c256_i32_12] : memref<8x384xf32, #tpu.memory_space<any>> -> memref<8x128xf32, #tpu.memory_space<any>>
    %16 = tpu.memref_slice %arg4[%c2_i32_10] : memref<3x!tpu.dma_semaphore, #tpu.memory_space<semaphore_mem>> -> memref<1x!tpu.dma_semaphore, #tpu.memory_space<semaphore_mem>>
    %17 = tpu.memref_squeeze %16 : memref<1x!tpu.dma_semaphore, #tpu.memory_space<semaphore_mem>> -> memref<!tpu.dma_semaphore, #tpu.memory_space<semaphore_mem>>
    tpu.wait_dma2 semaphore(%17 : memref<!tpu.dma_semaphore, #tpu.memory_space<semaphore_mem>>) src(%arg2 : memref<8x128xf32, #tpu.memory_space<any>>) dst(%15 : memref<8x128xf32, #tpu.memory_space<any>>)
    return
  }
}

</mosaic_0001>

<llo_original>
// kernel: tpu_custom_call.1
$region0: #{tpu_custom_call.1}
  #allocation0 [shape = 'u32[]', space=smem, size = 0x4, offset = 0x4, fixed_abs, tag = 'smem constant byte address 0x4 - core index']
  #allocation1 [shape = 'u32[144,128]{1,0:T(1,128)}', space=vmem, size = 0x12000, scoped, tag = 'internal scratch']
  #allocation2 [shape = 's32[3]{0}', space=sflag, size = 0xc, scoped, tag = 'scratch operand']
  #allocation3 [shape = 's32[]', space=sflag, size = 0x4, offset = 0, fixed_abs, tag = 'sflag constant byte address 0x0 - dummy sync flag']
  #allocation4 [shape = 'u32[0]{0}', space=smem, size = 0, offset = 0, fixed_abs, tag = 'smem constant byte address 0x0 - null']
  #allocation5 [shape = 's32[]', space=sflag, size = 0x4, offset = 0, fixed_abs, tag = 'sflag constant byte address 0x0 - dummy sync flag']
  #allocation6 [shape = 'u32[0]{0}', space=smem, size = 0, offset = 0, fixed_abs, tag = 'smem constant byte address 0x0 - null']
  #allocation7 [shape = 's32[]', space=sflag, size = 0x4, offset = 0, fixed_abs, tag = 'sflag constant byte address 0x0 - dummy sync flag']
  #allocation8 [shape = 'u32[0]{0}', space=smem, size = 0, offset = 0, fixed_abs, tag = 'smem constant byte address 0x0 - null']
  %s0 = inlined_call_operand.hbm [shape: f32[8,128], index: 0, kind: input, shape index: {}]
  %s1 = inlined_call_operand.hbm [shape: f32[8,128], index: 1, kind: input, shape index: {}]
  %s2 = inlined_call_operand.hbm [shape: f32[8,128], index: 2, kind: input, shape index: {}]
  %s3 = inlined_call_operand.hbm [shape: f32[8,384], index: 3, kind: output, shape index: {}]
  %s4 = sld [smem:[#allocation0]]
  $region2: #{tpu_custom_call.1} parent=0
    _
  %s6 = ssub.s32 1, %s4
  %s7 = scalar_select 0, %s6, %s4
  %s9 = sshll.u32 1, 14
  %s10 = sxor.u32 4294967295, %s9
  %s13 = sshll.u32 3, 24
  %s14 = sxor.u32 4294967295, %s13
  %s15 = sand.u32 0, %s14
  %s17 = sor.u32 %s15, 0
  %20 = dma.general %s0, 128, %s3, [#allocation2], [#allocation3], [#allocation4], %s17, 0
  %s21 = scalar_lea.hbm %s3, 128
  %s22 = scalar_lea.sflag [#allocation2], 1
  %s24 = sshll.u32 1, 14
  %s25 = sxor.u32 4294967295, %s24
  %s28 = sshll.u32 3, 24
  %s29 = sxor.u32 4294967295, %s28
  %s30 = sand.u32 0, %s29
  %s32 = sor.u32 %s30, 0
  %35 = dma.general %s1, 128, %s21, %s22, [#allocation5], [#allocation6], %s32, 0
  %s36 = scalar_lea.hbm %s3, 256
  %s37 = scalar_lea.sflag [#allocation2], 2
  %s39 = sshll.u32 1, 14
  %s40 = sxor.u32 4294967295, %s39
  %s43 = sshll.u32 3, 24
  %s44 = sxor.u32 4294967295, %s43
  %s45 = sand.u32 0, %s44
  %s47 = sor.u32 %s45, 0
  %50 = dma.general %s2, 128, %s36, %s37, [#allocation7], [#allocation8], %s47, 0
  %s51 = smul.u32 8, 1
  %s52 = smul.u32 %s51, 1
  %s53 = sshll.u32 %s52, 4
  %54 = dma.done [#allocation2], %s53
  %s55 = sshll.u32 %s52, 4
  %56 = dma.done %s22, %s55
  %s57 = sshll.u32 %s52, 4
  %58 = dma.done %s37, %s57
  %59 = vsyncmov [#allocation2]
  %s60 = vpop.sfrf %59
  %p61 = scmp.eq.s32.totalorder %s60, 0
  %p62 = pneg %p61
  %64 = shalt.err (%p62)
  %s65 = scalar_lea.sflag [#allocation2], 1
  %66 = vsyncmov %s65
  %s67 = vpop.sfrf %66
  %p68 = scmp.eq.s32.totalorder %s67, 0
  %p69 = pneg %p68
  %71 = shalt.err (%p69)
  %s72 = scalar_lea.sflag [#allocation2], 2
  %73 = vsyncmov %s72
  %s74 = vpop.sfrf %73
  %p75 = scmp.eq.s32.totalorder %s74, 0
  %p76 = pneg %p75
  %78 = shalt.err (%p76)

</llo_original>
